<compile_context>
chip_gen: v5e
topology: v5e:2x2
jax: 0.10.0
libtpu: 0.0.40
codegen_flags: <defaults>
</compile_context>

<pallas_src>
import functools
import math

import jax
import jax.numpy as jnp
from jax.experimental import pallas as pl
from jax.experimental.pallas import tpu as pltpu


# ----------------------------------------------------------------------------
# Buffer setup (glue, plain JAX) — matches the PyTorch __init__ exactly.
# ----------------------------------------------------------------------------
def make_positional_encoding_table(max_len: int, d_model: int,
                                   dtype=jnp.float32) -> jnp.ndarray:
    """(max_len, 1, d_model) sinusoidal table, same as the registered buffer."""
    assert d_model % 2 == 0, "d_model must be even (same limitation as PyTorch original)"
    position = jnp.arange(max_len, dtype=jnp.float32)[:, None]            # (L, 1)
    div_term = jnp.exp(
        jnp.arange(0, d_model, 2, dtype=jnp.float32)
        * (-math.log(10000.0) / d_model))                                 # (D/2,)
    pe = jnp.zeros((max_len, d_model), dtype=jnp.float32)
    pe = pe.at[:, 0::2].set(jnp.sin(position * div_term))
    pe = pe.at[:, 1::2].set(jnp.cos(position * div_term))
    return pe[:, None, :].astype(dtype)   # pe.unsqueeze(0).transpose(0, 1)


# ----------------------------------------------------------------------------
# Pallas kernel: per-batch static-slice adds (no concat temporary).
# ----------------------------------------------------------------------------
def _pos_enc_kernel(x_ref, pe_ref, o_ref, *, batch_per_tile: int, d_model: int):
    # x_ref / o_ref: (seq_tile, batch_per_tile * d_model) tiles in x.dtype
    # pe_ref:        (seq_tile, d_model) float32
    pe = pe_ref[...]                                     # stays in a few vregs
    for b in range(batch_per_tile):                      # compile-time unrolled
        sl = slice(b * d_model, (b + 1) * d_model)       # static, lane-aligned
        o_ref[:, sl] = (x_ref[:, sl].astype(jnp.float32) + pe).astype(o_ref.dtype)


# ----------------------------------------------------------------------------
# Tiling heuristics (generation-aware).
# ----------------------------------------------------------------------------
_TARGET_TILE_BYTES = 8 * 1024 * 1024   # 4-8 MiB x-tiles amortize ~0.35 us/step


def _sublane_multiple(dtype) -> int:
    # f32 -> 8, bf16 -> 16, int8/fp8 -> 32 (native packed-sublane multiples).
    return max(8, 32 // jnp.dtype(dtype).itemsize)


def _hw_params():
    """(vmem_capacity_bytes, tensorcores_per_chip) with safe fallbacks."""
    vmem_cap = 64 * 1024 * 1024       # conservative default (v7x capacity)
    num_cores = 1                     # conservative: never force extra splits
    try:
        info = pltpu.get_tpu_info()
        cap = getattr(info, "vmem_capacity_bytes", None)
        if cap:
            vmem_cap = int(cap)
        for name in ("num_tensorcores", "tensor_cores_per_chip", "num_cores",
                     "cores_per_chip", "core_count"):
            v = getattr(info, name, None)
            if v:
                num_cores = int(v)
                break
    except Exception:
        pass
    return vmem_cap, num_cores


def _pick_tiling(S: int, B: int, D: int, itemsize: int, sub: int,
                 vmem_budget: int) -> tuple[int, int]:
    """Return (seq_tile, batch_per_tile)."""
    def working_set(rows: int, bt: int) -> int:
        # double-buffered: 2 * (x_in tile + out tile + f32 pe tile)
        return 2 * (2 * rows * bt * D * itemsize + rows * D * 4)

    # Lane-axis (batch-group) tiling only when even the minimum-height tile
    # would blow the VMEM budget, and only when D is lane-aligned so blocks
    # stay unmasked multiples of 128.
    bt = B
    if B > 1 and D % 128 == 0 and working_set(sub, B) > vmem_budget:
        bt = 1
        for cand in range(B - 1, 0, -1):
            if B % cand == 0 and working_set(sub, cand) <= vmem_budget:
                bt = cand
                break

    row_bytes = bt * D * itemsize
    rows_target = _TARGET_TILE_BYTES // max(1, row_bytes)
    rows_vmem = vmem_budget // max(1, 2 * (2 * row_bytes + D * 4))
    t = max(sub, min(rows_target, rows_vmem))
    t = max(sub, (t // sub) * sub)
    if t >= S:
        t = S
    return t, bt


# ----------------------------------------------------------------------------
# Wrapper
# ----------------------------------------------------------------------------
def positional_encoding(x: jnp.ndarray, pe: jnp.ndarray,
                        seq_tile: int | None = None,
                        donate_x: bool = False) -> jnp.ndarray:
    """x: (S, B, D);  pe: (max_len, 1, D) with max_len >= S.

    If donate_x=True, also donate x at the jit boundary (donate_argnums) so the
    input_output_aliases={0:0} alias becomes a true in-place buffer.
    """
    S, B, D = x.shape
    max_len = pe.shape[0]
    if S > max_len:
        raise ValueError(f"seq_len {S} exceeds positional-encoding max_len {max_len}")
    if pe.shape[-1] != D:
        raise ValueError("d_model mismatch between x and pe")

    dtype = x.dtype
    itemsize = jnp.dtype(dtype).itemsize
    sub = _sublane_multiple(dtype)

    # pe kept in float32; the add happens in f32 and is cast to x.dtype, which
    # matches the PyTorch fp32 buffer semantics for low-precision inputs.
    pe2 = pe.reshape(max_len, D)[:S].astype(jnp.float32)   # (S, D)
    x2 = x.reshape(S, B * D)                               # contiguous => free

    vmem_cap, num_cores = _hw_params()
    vmem_budget = max(24 * 1024 * 1024, vmem_cap - 12 * 1024 * 1024)

    auto_tile, bt = _pick_tiling(S, B, D, itemsize, sub, vmem_budget)
    if seq_tile is None:
        seq_tile = auto_tile
        # v7x megacore: if everything collapsed to a single grid step but the
        # sequence can be split into two sublane-aligned near-halves, do so,
        # so both TensorCores get balanced work.  Skipped on 1-TC v5e/v6e.
        if (num_cores >= 2 and S > sub
                and pl.cdiv(S, seq_tile) * pl.cdiv(B, bt) == 1):
            half = ((-(-S // 2) + sub - 1) // sub) * sub
            if half < S:
                seq_tile = half
    else:
        st = max(1, min(int(seq_tile), S))
        if st < S:
            st = max(sub, (st // sub) * sub)
            if st >= S:
                st = S
        seq_tile = st

    grid = (pl.cdiv(S, seq_tile), pl.cdiv(B, bt))

    # Double-buffered working set and generation-clamped VMEM limit.
    x_tile_bytes = seq_tile * bt * D * itemsize
    pe_tile_bytes = seq_tile * D * 4
    working_set = 2 * (2 * x_tile_bytes + pe_tile_bytes)
    vmem_limit = int(min(vmem_cap - 8 * 1024 * 1024,
                         max(32 * 1024 * 1024, working_set + 4 * 1024 * 1024)))
    vmem_limit = max(vmem_limit, working_set + 1024 * 1024)

    kernel = functools.partial(_pos_enc_kernel, batch_per_tile=bt, d_model=D)
    out2 = pl.pallas_call(
        kernel,
        out_shape=jax.ShapeDtypeStruct((S, B * D), dtype),
        grid_spec=pltpu.PrefetchScalarGridSpec(
            num_scalar_prefetch=0,
            grid=grid,
            in_specs=[
                pl.BlockSpec((seq_tile, bt * D), lambda i, j: (i, j)),   # x slab
                pl.BlockSpec((seq_tile, D), lambda i, j: (i, 0)),        # pe rows
            ],
            out_specs=pl.BlockSpec((seq_tile, bt * D), lambda i, j: (i, j)),
        ),
        compiler_params=pltpu.CompilerParams(
            dimension_semantics=("parallel", "parallel"),
            vmem_limit_bytes=vmem_limit),
        input_output_aliases=({0: 0} if donate_x else {}),
    )(x2, pe2)

    return out2.reshape(S, B, D)


# ----------------------------------------------------------------------------
# Demo / self-check
# ----------------------------------------------------------------------------
if __name__ == "__main__":
    d_model = 128
    max_len = 64
    key = jax.random.PRNGKey(0)
    k1, k2 = jax.random.split(key)

    pe = make_positional_encoding_table(max_len, d_model)     # (64, 1, 128)

    # Case 1: f32, forced small seq_tile -> multi-step grid with a partial
    # last sequence block (exercises cdiv tiling and masked edge handling).
    S1, B1 = 20, 2
    x1 = jax.random.normal(k1, (S1, B1, d_model), dtype=jnp.float32)
    y1 = jax.block_until_ready(positional_encoding(x1, pe, seq_tile=8))
    ref1 = x1 + pe[:S1]
    assert y1.shape == (S1, B1, d_model)
    assert jnp.allclose(y1, ref1, atol=1e-6, rtol=1e-6), "f32 mismatch vs reference"

    # Case 2: bf16 input, auto tiling, batch=3 (per-batch static-slice adds);
    # kernel adds the f32 pe then casts, same as the reference below.
    S2, B2 = 16, 3
    x2 = jax.random.normal(k2, (S2, B2, d_model), dtype=jnp.float32).astype(jnp.bfloat16)
    y2 = jax.block_until_ready(positional_encoding(x2, pe))
    ref2 = (x2.astype(jnp.float32) + pe[:S2]).astype(jnp.bfloat16)
    assert y2.shape == (S2, B2, d_model)
    assert jnp.allclose(y2.astype(jnp.float32), ref2.astype(jnp.float32),
                        atol=1e-2, rtol=1e-2), "bf16 mismatch vs reference"

    print("KERNEL_OK")
</pallas_src>

<mosaic_0001>
module attributes {stable_mosaic.version = 11 : i64} {
  func.func @_pos_enc_kernel(%arg0: i32, %arg1: i32, %arg2: memref<8x256xf32, #tpu.memory_space<vmem>>, %arg3: memref<8x128xf32, #tpu.memory_space<vmem>>, %arg4: memref<8x256xf32, #tpu.memory_space<vmem>>) attributes {dimension_semantics = [#tpu.dimension_semantics<parallel>, #tpu.dimension_semantics<parallel>], iteration_bounds = array<i64: 3, 1>, scalar_prefetch = 0 : i64, scratch_operands = 0 : i64, tpu.core_type = #tpu.core_type<tc>, window_params = [{transform_indices = @transform_0, window_bounds = array<i64: 8, 256>}, {transform_indices = @transform_1, window_bounds = array<i64: 8, 128>}, {transform_indices = @transform_2, window_bounds = array<i64: 8, 256>}]} {
    %c0 = arith.constant 0 : index
    %c0_0 = arith.constant 0 : index
    %0 = vector.load %arg3[%c0, %c0_0] : memref<8x128xf32, #tpu.memory_space<vmem>>, vector<8x128xf32>
    %c0_1 = arith.constant 0 : index
    %c0_2 = arith.constant 0 : index
    %1 = vector.load %arg2[%c0_1, %c0_2] : memref<8x256xf32, #tpu.memory_space<vmem>>, vector<8x128xf32>
    %2 = arith.addf %1, %0 : vector<8x128xf32>
    %c0_3 = arith.constant 0 : index
    %c0_4 = arith.constant 0 : index
    %3 = vector.load %arg4[%c0_3, %c0_4] : memref<8x256xf32, #tpu.memory_space<vmem>>, vector<8x128xf32>
    tpu.vector_store %arg4[%c0_3, %c0_4], %2 {strides = array<i32>} : memref<8x256xf32, #tpu.memory_space<vmem>>, vector<8x128xf32>,
    %c0_5 = arith.constant 0 : index
    %c128 = arith.constant 128 : index
    %4 = vector.load %arg2[%c0_5, %c128] : memref<8x256xf32, #tpu.memory_space<vmem>>, vector<8x128xf32>
    %5 = arith.addf %4, %0 : vector<8x128xf32>
    %c0_6 = arith.constant 0 : index
    %c128_7 = arith.constant 128 : index
    %6 = vector.load %arg4[%c0_6, %c128_7] : memref<8x256xf32, #tpu.memory_space<vmem>>, vector<8x128xf32>
    tpu.vector_store %arg4[%c0_6, %c128_7], %5 {strides = array<i32>} : memref<8x256xf32, #tpu.memory_space<vmem>>, vector<8x128xf32>,
    return
  }
  func.func @transform_0(%arg0: i32, %arg1: i32) -> (i32, i32) {
    %c0_i32 = arith.constant 0 : i32
    return %arg0, %arg1 : i32, i32
  }
  func.func @transform_1(%arg0: i32, %arg1: i32) -> (i32, i32) {
    %c0_i32 = arith.constant 0 : i32
    %c0_i32_0 = arith.constant 0 : i32
    return %arg0, %c0_i32 : i32, i32
  }
  func.func @transform_2(%arg0: i32, %arg1: i32) -> (i32, i32) {
    %c0_i32 = arith.constant 0 : i32
    return %arg0, %arg1 : i32, i32
  }
}

</mosaic_0001>

<llo_original>
// kernel: tpu_custom_call.1
$region0: #{tpu_custom_call.1}
  #allocation0 [shape = 'u32[]', space=smem, size = 0x4, offset = 0x4, fixed_abs, tag = 'smem constant byte address 0x4 - core index']
  #allocation1 [shape = 'u32[72,128]{1,0:T(1,128)}', space=vmem, size = 0x9000, scoped, tag = 'internal scratch']
  %s0 = inlined_call_operand.hbm [shape: f32[20,256], index: 0, kind: input, shape index: {}]
  %s1 = inlined_call_operand.hbm [shape: f32[20,128], index: 1, kind: input, shape index: {}]
  %s2 = inlined_call_operand.hbm [shape: f32[20,256], index: 2, kind: output, shape index: {}]
  %s3 = sld [smem:[#allocation0]]
  $region49: #{tpu_custom_call.1} parent=0
    _
  %s5 = ssub.s32 1, %s3
  %s6 = scalar_select 0, %s5, %s3
  $region1: #{tpu_custom_call.1} parent=0
    #allocation2 [shape = 'u8[16384]{0}', space=vmem, size = 0x4000, scoped, tag = 'input window, operand 0']
    #allocation3 [shape = 's32[2]{0}', space=sflag, size = 0x8, scoped, tag = 'scoped memory for tpu_custom_call.1']
    #allocation4 [shape = 's32[2]{0}', space=sflag, size = 0x8, scoped, tag = 'scoped memory for tpu_custom_call.1']
    #allocation5 [shape = 'u8[8192]{0}', space=vmem, size = 0x2000, scoped, tag = 'input window, operand 1']
    #allocation6 [shape = 's32[2]{0}', space=sflag, size = 0x8, scoped, tag = 'scoped memory for tpu_custom_call.1']
    #allocation7 [shape = 'u8[16384]{0}', space=vmem, size = 0x4000, scoped, tag = 'output window, operand 0']
    %7 = vsyncpa [#allocation3], 0
    %s8 = scalar_lea.sflag [#allocation3], 1
    %9 = vsyncpa %s8, 0
    %10 = vsyncpa [#allocation6], 0
    %s11 = scalar_lea.sflag [#allocation6], 1
    %12 = vsyncpa %s11, 0
    %13 = vsyncpa [#allocation4], 0
    %s14 = scalar_lea.sflag [#allocation4], 1
    %15 = vsyncpa %s14, 0
    loop: start=0, step=1, limit=5
    $region2: #{tpu_custom_call.1} parent=1 // loop_pre_header
      _
    $region3: #{tpu_custom_call.1} parent=1 // loop_header
      %s17 = sphi 0, %s21
      %p18 = scmp.ge.s32.totalorder %s17, 5
      %s24 = sphi 0, %s36
      %s25 = sphi 0, %s32
      %s26 = sphi 0, %s24
      %s27 = sphi 0, %s25
      %s28 = sphi 0, %s26
      %s29 = sphi 0, %s27
      %s41 = sphi 0, %s43
      %s44 = sphi 0, %s41
      %s45 = sphi 0, %s44
      %s61 = sphi 0, %s45
      %s67 = sphi 0, %s69
      %s70 = sphi 0, %s67
      %s71 = sphi 0, %s70
      %s87 = sphi 0, %s71
      %s95 = sphi 0, %s97
      %s98 = sphi 0, %s95
      %s99 = sphi 0, %s98
      %s115 = sphi 0, %s99
    $region4: #{tpu_custom_call.1} parent=1 // loop_header_branch
      %20 = sbr.rel (%p18) target = $region8
    $region5: #{tpu_custom_call.1} parent=1 // loop_body
      %s22 = ssub.s32 %s17, 1
      %s23 = ssub.s32 %s17, 2
      %s30 = sadd.s32 1, %s25
      %p31 = scmp.ge.s32.totalorder %s30, 1
      %s32 = scalar_select %p31, 0, %s30
      %s33 = sadd.s32 1, %s24
      %s34 = scalar_select %p31, %s33, %s24
      %p35 = scmp.ge.s32.totalorder %s34, 3
      %s36 = scalar_select %p35, 0, %s34
      %s37 = ssub.s32 %s24, %s36
      %s38 = ssub.s32 %s25, %s32
      %s39 = sor.u32 %s37, %s38
      %p40 = scmp.eq.s32.totalorder %s39, 0
      %s42 = sadd.s32 %s41, 1
      %s43 = scalar_select %p40, %s41, %s42
      %p46 = pneg %p40
      %p47 = scmp.eq.s32.totalorder %s17, 2
      %p48 = por %p46, %p47
      %p49 = scmp.ne.s32.totalorder %s41, %s44
      %p50 = scmp.eq.s32.totalorder %s17, 0
      %p51 = por %p49, %p50
      %p52 = scmp.ne.s32.totalorder %s41, %s44
      %p53 = scmp.eq.s32.totalorder %s22, 2
      %p54 = por %p52, %p53
      %p55 = scmp.ne.s32.totalorder %s44, %s45
      %p56 = scmp.eq.s32.totalorder %s22, 0
      %p57 = por %p55, %p56
      %p58 = scmp.ne.s32.totalorder %s44, %s45
      %p59 = scmp.eq.s32.totalorder %s23, 2
      %p60 = por %p58, %p59
      %p62 = scmp.ne.s32.totalorder %s45, %s61
      %p63 = scmp.eq.s32.totalorder %s23, 0
      %p64 = por %p62, %p63
      %s65 = ssub.s32 %s24, %s36
      %p66 = scmp.eq.s32.totalorder %s65, 0
      %s68 = sadd.s32 %s67, 1
      %s69 = scalar_select %p66, %s67, %s68
      %p72 = pneg %p66
      %p73 = scmp.eq.s32.totalorder %s17, 2
      %p74 = por %p72, %p73
      %p75 = scmp.ne.s32.totalorder %s67, %s70
      %p76 = scmp.eq.s32.totalorder %s17, 0
      %p77 = por %p75, %p76
      %p78 = scmp.ne.s32.totalorder %s67, %s70
      %p79 = scmp.eq.s32.totalorder %s22, 2
      %p80 = por %p78, %p79
      %p81 = scmp.ne.s32.totalorder %s70, %s71
      %p82 = scmp.eq.s32.totalorder %s22, 0
      %p83 = por %p81, %p82
      %p84 = scmp.ne.s32.totalorder %s70, %s71
      %p85 = scmp.eq.s32.totalorder %s23, 2
      %p86 = por %p84, %p85
      %p88 = scmp.ne.s32.totalorder %s71, %s87
      %p89 = scmp.eq.s32.totalorder %s23, 0
      %p90 = por %p88, %p89
      %s91 = ssub.s32 %s24, %s36
      %s92 = ssub.s32 %s25, %s32
      %s93 = sor.u32 %s91, %s92
      %p94 = scmp.eq.s32.totalorder %s93, 0
      %s96 = sadd.s32 %s95, 1
      %s97 = scalar_select %p94, %s95, %s96
      %p100 = pneg %p94
      %p101 = scmp.eq.s32.totalorder %s17, 2
      %p102 = por %p100, %p101
      %p103 = scmp.ne.s32.totalorder %s95, %s98
      %p104 = scmp.eq.s32.totalorder %s17, 0
      %p105 = por %p103, %p104
      %p106 = scmp.ne.s32.totalorder %s95, %s98
      %p107 = scmp.eq.s32.totalorder %s22, 2
      %p108 = por %p106, %p107
      %p109 = scmp.ne.s32.totalorder %s98, %s99
      %p110 = scmp.eq.s32.totalorder %s22, 0
      %p111 = por %p109, %p110
      %p112 = scmp.ne.s32.totalorder %s98, %s99
      %p113 = scmp.eq.s32.totalorder %s23, 2
      %p114 = por %p112, %p113
      %p116 = scmp.ne.s32.totalorder %s99, %s115
      %p117 = scmp.eq.s32.totalorder %s23, 0
      %p118 = por %p116, %p117
      %p119 = scmp.le.s32.totalorder 1, %s17
      %p120 = scmp.lt.s32.totalorder %s17, 4
      %p121 = pnand %p119, %p120
      %p122 = pneg %p121
      // Predicated region
      $region9: #{tpu_custom_call.1} parent=5 // pred_check
        _
      $region10: #{tpu_custom_call.1} parent=5 // pred_check_branch
        %124 = sbr.rel (%p121) target = $region12
      $region11: #{tpu_custom_call.1} parent=5 // pred_region
        %s125 = ssub.s32 %s17, 1
      $region12: #{tpu_custom_call.1} parent=5 // pred_fallthru
        _
      %p126 = scmp.lt.s32.totalorder %s17, 3
      // Predicated region
      $region13: #{tpu_custom_call.1} parent=5 // pred_check
        %p127 = pneg %p126
      $region14: #{tpu_custom_call.1} parent=5 // pred_check_branch
        %129 = sbr.rel (%p127) target = $region16
      $region15: #{tpu_custom_call.1} parent=5 // pred_region
        // Predicated region
        $region17: #{tpu_custom_call.1} parent=15 // pred_check
          %p130 = pneg %p51
        $region18: #{tpu_custom_call.1} parent=15 // pred_check_branch
          %132 = sbr.rel (%p130) target = $region20
        $region19: #{tpu_custom_call.1} parent=15 // pred_region
          %s133 = sand.u32 %s41, 1
          %s134 = scalar_lea.sflag [#allocation3], %s133
          %s135 = sand.u32 %s41, 1
          %s136 = smul.addr %s135, 16
          %s137 = scalar_lea.vmem [#allocation2], %s136
          %s138 = smul.u32 2, %s25
          %140 = vsyncadd %s134, 0
          %s141 = smul.addr %s24, 2
          %s142 = sadd.s32 %s138, %s141
          %s143 = smul.addr %s142, 8
          %s144 = scalar_lea.hbm %s0, %s143
          %s146 = sshll.u32 %s144, 4
          %s147 = int_to_ptr.hbm [resolvable:$true] %s146
          %s148 = sshll.u32 %s137, 4
          %s149 = int_to_ptr.vmem [resolvable:$true] %s148
          %151 = dma.hbm_to_vmem [thread:$0]  %s147, 256, %s149, %s134
        $region20: #{tpu_custom_call.1} parent=15 // pred_fallthru
          _
        // Predicated region
        $region21: #{tpu_custom_call.1} parent=15 // pred_check
          %p152 = pneg %p77
        $region22: #{tpu_custom_call.1} parent=15 // pred_check_branch
          %154 = sbr.rel (%p152) target = $region24
        $region23: #{tpu_custom_call.1} parent=15 // pred_region
          %s155 = sand.u32 %s67, 1
          %s156 = scalar_lea.sflag [#allocation6], %s155
          %s157 = sand.u32 %s67, 1
          %s158 = smul.addr %s157, 8
          %s159 = scalar_lea.vmem [#allocation5], %s158
          %161 = vsyncadd %s156, 0
          %s162 = smul.addr %s24, 8
          %s163 = scalar_lea.hbm %s1, %s162
          %s165 = sshll.u32 %s163, 4
          %s166 = int_to_ptr.hbm [resolvable:$true] %s165
          %s167 = sshll.u32 %s159, 4
          %s168 = int_to_ptr.vmem [resolvable:$true] %s167
          %170 = dma.hbm_to_vmem [thread:$0]  %s166, 128, %s168, %s156
        $region24: #{tpu_custom_call.1} parent=15 // pred_fallthru
          _
      $region16: #{tpu_custom_call.1} parent=5 // pred_fallthru
        _
      %p171 = scmp.le.s32.totalorder 1, %s17
      %p172 = scmp.lt.s32.totalorder %s17, 4
      %p173 = pnand %p171, %p172
      %p174 = pneg %p173
      // Predicated region
      $region25: #{tpu_custom_call.1} parent=5 // pred_check
        _
      $region26: #{tpu_custom_call.1} parent=5 // pred_check_branch
        %176 = sbr.rel (%p173) target = $region28
      $region27: #{tpu_custom_call.1} parent=5 // pred_region
        %s177 = ssub.s32 %s17, 1
        %s178 = sand.u32 %s44, 1
        %s179 = scalar_lea.sflag [#allocation3], %s178
        %s180 = sand.u32 %s44, 1
        %s181 = smul.addr %s180, 16
        %s182 = scalar_lea.vmem [#allocation2], %s181
        // Predicated region
        $region29: #{tpu_custom_call.1} parent=27 // pred_check
          %p183 = pneg %p57
        $region30: #{tpu_custom_call.1} parent=27 // pred_check_branch
          %185 = sbr.rel (%p183) target = $region32
        $region31: #{tpu_custom_call.1} parent=27 // pred_region
          %187 = dma.done %s179, 256
        $region32: #{tpu_custom_call.1} parent=27 // pred_fallthru
          _
        %s188 = sand.u32 %s70, 1
        %s189 = scalar_lea.sflag [#allocation6], %s188
        %s190 = sand.u32 %s70, 1
        %s191 = smul.addr %s190, 8
        %s192 = scalar_lea.vmem [#allocation5], %s191
        // Predicated region
        $region33: #{tpu_custom_call.1} parent=27 // pred_check
          %p193 = pneg %p83
        $region34: #{tpu_custom_call.1} parent=27 // pred_check_branch
          %195 = sbr.rel (%p193) target = $region36
        $region35: #{tpu_custom_call.1} parent=27 // pred_region
          %197 = dma.done %s189, 128
        $region36: #{tpu_custom_call.1} parent=27 // pred_fallthru
          _
        %s198 = sand.u32 %s44, 1
        %s199 = scalar_lea.sflag [#allocation3], %s198
        %s200 = sand.u32 %s44, 1
        %s201 = smul.addr %s200, 16
        %s202 = scalar_lea.vmem [#allocation2], %s201
        %p203 = pneg %p57
        %p204 = pneg %p54
        %s205 = sand.u32 %s70, 1
        %s206 = scalar_lea.sflag [#allocation6], %s205
        %s207 = sand.u32 %s70, 1
        %s208 = smul.addr %s207, 8
        %s209 = scalar_lea.vmem [#allocation5], %s208
        %p210 = pneg %p83
        %p211 = pneg %p80
        %p212 = pneg %p111
        %p213 = pneg %p108
        %s214 = sand.u32 %s98, 1
        %s215 = scalar_lea.sflag [#allocation4], %s214
        %s216 = sand.u32 %s98, 1
        %s217 = smul.addr %s216, 16
        %s218 = scalar_lea.vmem [#allocation7], %s217
        %s219 = smul.u32 2, %s27
        %s220 = smul.u32 2, %s27
        %v221 = vld [vmem:[%s192] sm:$0xff]
        %v222 = vld [vmem:[%s182] sm:$0xff]
        %v223 = vadd.f32 %v222, %v221
        %224 = vst [vmem:[%s218] sm:$0xff] %v223
        %v225 = vld [vmem:[%s182 + $0x8] sm:$0xff]
        %v226 = vadd.f32 %v225, %v221
        %227 = vst [vmem:[%s218 + $0x8] sm:$0xff] %v226
        %s228 = sand.u32 %s98, 1
        %s229 = scalar_lea.sflag [#allocation4], %s228
        %s230 = sand.u32 %s98, 1
        %s231 = smul.addr %s230, 16
        %s232 = scalar_lea.vmem [#allocation7], %s231
        // Predicated region
        $region37: #{tpu_custom_call.1} parent=27 // pred_check
          %p233 = pneg %p108
        $region38: #{tpu_custom_call.1} parent=27 // pred_check_branch
          %235 = sbr.rel (%p233) target = $region40
        $region39: #{tpu_custom_call.1} parent=27 // pred_region
          %s236 = smul.u32 2, %s27
          %238 = vsyncadd %s229, 0
          %s239 = smul.addr %s26, 2
          %s240 = sadd.s32 %s236, %s239
          %s241 = smul.addr %s240, 8
          %s242 = scalar_lea.hbm %s2, %s241
          %s244 = sshll.u32 %s232, 4
          %s245 = int_to_ptr.vmem [resolvable:$true] %s244
          %s246 = sshll.u32 %s242, 4
          %s247 = int_to_ptr.hbm [resolvable:$true] %s246
          %249 = dma.vmem_to_hbm [thread:$0]  %s245, 256, %s247, %s229
        $region40: #{tpu_custom_call.1} parent=27 // pred_fallthru
          _
      $region28: #{tpu_custom_call.1} parent=5 // pred_fallthru
        _
      %p250 = scmp.le.s32.totalorder 2, %s17
      // Predicated region
      $region41: #{tpu_custom_call.1} parent=5 // pred_check
        %p251 = pneg %p250
      $region42: #{tpu_custom_call.1} parent=5 // pred_check_branch
        %253 = sbr.rel (%p251) target = $region44
      $region43: #{tpu_custom_call.1} parent=5 // pred_region
        %s254 = ssub.s32 %s17, 2
        // Predicated region
        $region45: #{tpu_custom_call.1} parent=43 // pred_check
          %p255 = pneg %p114
        $region46: #{tpu_custom_call.1} parent=43 // pred_check_branch
          %257 = sbr.rel (%p255) target = $region48
        $region47: #{tpu_custom_call.1} parent=43 // pred_region
          %s258 = sand.u32 %s99, 1
          %s259 = scalar_lea.sflag [#allocation4], %s258
          %s260 = sand.u32 %s99, 1
          %s261 = smul.addr %s260, 16
          %s262 = scalar_lea.vmem [#allocation7], %s261
          %264 = dma.done %s259, 256
        $region48: #{tpu_custom_call.1} parent=43 // pred_fallthru
          _
      $region44: #{tpu_custom_call.1} parent=5 // pred_fallthru
        _
    $region6: #{tpu_custom_call.1} parent=1 // loop_footer
      %s21 = sadd.s32 1, %s17
    $region7: #{tpu_custom_call.1} parent=1 // loop_footer_branch
      %16 = sbr.rel target = $region3
    $region8: #{tpu_custom_call.1} parent=1 // loop_exit
      _
    %265 = vsyncpa [#allocation3], 1
    %s266 = scalar_lea.sflag [#allocation3], 1
    %267 = vsyncpa %s266, 1
    %268 = vsyncpa [#allocation6], 1
    %s269 = scalar_lea.sflag [#allocation6], 1
    %270 = vsyncpa %s269, 1
    %271 = vsyncpa [#allocation4], 1
    %s272 = scalar_lea.sflag [#allocation4], 1
    %273 = vsyncpa %s272, 1

</llo_original>
